<compile_context>
chip_gen: v7x
topology: tpu7x:2x2x1
jax: 0.10.0
libtpu: 0.0.40
codegen_flags: <defaults>
</compile_context>

<pallas_src>
import functools

import jax
import jax.numpy as jnp
from jax.experimental import pallas as pl
from jax.experimental.pallas import tpu as pltpu


# ---------------------------------------------------------------------------
# VMEM budgeting (generation-aware)
# ---------------------------------------------------------------------------
def _vmem_budgets(itemsize):
    """Return (scoped vmem limit, per-block byte budget) for this TPU generation."""
    try:
        phys = int(pltpu.get_tpu_info().vmem_capacity_bytes)
    except Exception:
        phys = 64 * 1024 * 1024  # conservative fallback: v7x per-TC VMEM
    if phys >= 96 * 1024 * 1024:          # v5e / v6e: 128 MiB physical
        vmem_limit = 100 * 1024 * 1024
    else:                                  # v7x: 64 MiB per TensorCore
        vmem_limit = 44 * 1024 * 1024
    # Residency per grid step:
    #   2x block (input double buffer) + 2x block (output double buffer)
    # + 1x block-sized elementwise product temp at f32 width (4/itemsize blocks)
    # + ~1 block of slack for compiler temps, plus 4 MiB headroom for weights
    #   and Mosaic internal scratch.
    bufs = 5 + 4 // itemsize              # f32 -> 6, bf16 -> 7
    block_budget = (vmem_limit - 4 * 1024 * 1024) // bufs
    return vmem_limit, block_budget


def _choose_batch_tile(B, slab_bytes, block_budget):
    """Largest batch tile whose (Bt, C, HW) block fits the budget, but prefer
    >= 4 grid steps (>= 2 per TC on v7x megacore; enough steps for DMA
    pipelining on single-TC v5e/v6e) as long as blocks stay >= ~1 MiB."""
    fit = max(1, block_budget // slab_bytes)
    bt = min(B, fit)
    target_steps = 4
    min_block_bytes = 1 << 20
    bt_for_steps = max(1, -(-B // target_steps))   # cdiv(B, target_steps)
    if bt_for_steps < bt and bt_for_steps * slab_bytes >= min_block_bytes:
        bt = bt_for_steps
    return bt


# ---------------------------------------------------------------------------
# Single-pass kernel: whole (Bt, C, HW) slab per grid step
# ---------------------------------------------------------------------------
def _se_single_pass_kernel(x_ref, w1t_ref, b1_ref, w2t_ref, b2_ref, o_ref, *,
                           inv_hw):
    # --- squeeze: global average pool, f32 accumulate fused into the reduce
    # (no full-block f32 cast temp) ---
    mean = jnp.sum(x_ref[...], axis=-1, dtype=jnp.float32) * inv_hw   # (Bt, C)

    # --- excitation: dense C->Cr (+ReLU), dense Cr->C (+sigmoid), all f32 ---
    y1 = jnp.dot(mean, w1t_ref[...],
                 preferred_element_type=jnp.float32) + b1_ref[...]    # (Bt, Cr)
    y1 = jnp.maximum(y1, 0.0)
    gate = jax.nn.sigmoid(
        jnp.dot(y1, w2t_ref[...],
                preferred_element_type=jnp.float32) + b2_ref[...])    # (Bt, C) f32

    # --- rescale: re-read the ref (short live ranges), multiply with the f32
    # gate (no gate pre-rounding), single downcast at the store ---
    o_ref[...] = (x_ref[...] * gate[:, :, None]).astype(o_ref.dtype)


def _se_single_pass(x, w1t, b1, w2t, b2, hw_true, block_budget, vmem_limit):
    B, C, HW = x.shape
    Cr = w1t.shape[1]
    slab = C * HW * x.dtype.itemsize
    Bt = _choose_batch_tile(B, slab, block_budget)

    kern = functools.partial(_se_single_pass_kernel, inv_hw=1.0 / hw_true)
    return pl.pallas_call(
        kern,
        out_shape=jax.ShapeDtypeStruct((B, C, HW), x.dtype),
        grid_spec=pltpu.PrefetchScalarGridSpec(
            num_scalar_prefetch=0,
            grid=(pl.cdiv(B, Bt),),          # non-divisor Bt ok (partial last block)
            in_specs=[
                pl.BlockSpec((Bt, C, HW), lambda b: (b, 0, 0)),
                pl.BlockSpec((C, Cr), lambda b: (0, 0)),
                pl.BlockSpec((1, Cr), lambda b: (0, 0)),
                pl.BlockSpec((Cr, C), lambda b: (0, 0)),
                pl.BlockSpec((1, C), lambda b: (0, 0)),
            ],
            out_specs=pl.BlockSpec((Bt, C, HW), lambda b: (b, 0, 0)),
        ),
        compiler_params=pltpu.CompilerParams(
            dimension_semantics=("parallel",),
            vmem_limit_bytes=vmem_limit),
    )(x, w1t, b1, w2t, b2)


# ---------------------------------------------------------------------------
# Two-pass fallback: per-batch slab exceeds the VMEM block budget
# ---------------------------------------------------------------------------
def _se_gate_kernel(x_ref, w1t_ref, b1_ref, w2t_ref, b2_ref, gate_ref, acc_ref,
                    *, inv_hw, hw_true, tile_hw, needs_mask):
    h = pl.program_id(1)

    @pl.when(h == 0)
    def _init():
        acc_ref[...] = jnp.zeros_like(acc_ref)

    x = x_ref[...]                                           # (1, C, tile_hw)
    if needs_mask:
        # Ragged last HW tile: exclude out-of-range lanes from the sum so the
        # mean only sees the true H*W elements.
        offs = h * tile_hw + jax.lax.broadcasted_iota(
            jnp.int32, (1, 1, tile_hw), 2)
        x = jnp.where(offs < hw_true, x, 0)
    acc_ref[...] += jnp.sum(x, axis=-1, dtype=jnp.float32)   # (1, C) f32

    @pl.when(h == pl.num_programs(1) - 1)
    def _finalize():
        mean = acc_ref[...] * inv_hw                          # (1, C)
        y1 = jnp.maximum(
            jnp.dot(mean, w1t_ref[...],
                    preferred_element_type=jnp.float32) + b1_ref[...], 0.0)
        gate = jax.nn.sigmoid(
            jnp.dot(y1, w2t_ref[...],
                    preferred_element_type=jnp.float32) + b2_ref[...])  # (1, C)
        gate_ref[...] = gate[:, :, None]                      # (1, C, 1)


def _se_scale_kernel(x_ref, gate_ref, o_ref):
    # (1, C, tile_hw) * (1, C, 1) f32 gate; single downcast at the store.
    o_ref[...] = (x_ref[...] * gate_ref[...]).astype(o_ref.dtype)


def _se_two_pass(x, w1t, b1, w2t, b2, hw_true, block_budget, vmem_limit):
    B, C, HW = x.shape
    Cr = w1t.shape[1]
    itemsize = x.dtype.itemsize

    # Lane-dense HW tiles (multiples of 128); only the final ragged tile is masked.
    tile_hw = (block_budget // (C * itemsize)) // 128 * 128
    tile_hw = max(128, tile_hw)
    tile_hw = min(tile_hw, -(-HW // 128) * 128)
    n_hw = pl.cdiv(HW, tile_hw)
    needs_mask = (HW % tile_hw) != 0

    gate_kern = functools.partial(
        _se_gate_kernel, inv_hw=1.0 / hw_true, hw_true=hw_true,
        tile_hw=tile_hw, needs_mask=needs_mask)

    # Pass 1: HW-tiled partial sums -> per-(B, C) gate.
    gate = pl.pallas_call(
        gate_kern,
        out_shape=jax.ShapeDtypeStruct((B, C, 1), jnp.float32),
        grid_spec=pltpu.PrefetchScalarGridSpec(
            num_scalar_prefetch=0,
            grid=(B, n_hw),                    # reduction axis last
            in_specs=[
                pl.BlockSpec((1, C, tile_hw), lambda b, h: (b, 0, h)),
                pl.BlockSpec((C, Cr), lambda b, h: (0, 0)),
                pl.BlockSpec((1, Cr), lambda b, h: (0, 0)),
                pl.BlockSpec((Cr, C), lambda b, h: (0, 0)),
                pl.BlockSpec((1, C), lambda b, h: (0, 0)),
            ],
            out_specs=pl.BlockSpec((1, C, 1), lambda b, h: (b, 0, 0)),
            scratch_shapes=[pltpu.VMEM((1, C), jnp.float32)],
        ),
        compiler_params=pltpu.CompilerParams(
            dimension_semantics=("parallel", "arbitrary"),
            vmem_limit_bytes=vmem_limit),
    )(x, w1t, b1, w2t, b2)

    # Pass 2: channel-wise rescale, same HW tiling (both axes independent).
    out = pl.pallas_call(
        _se_scale_kernel,
        out_shape=jax.ShapeDtypeStruct((B, C, HW), x.dtype),
        grid_spec=pltpu.PrefetchScalarGridSpec(
            num_scalar_prefetch=0,
            grid=(B, n_hw),
            in_specs=[
                pl.BlockSpec((1, C, tile_hw), lambda b, h: (b, 0, h)),
                pl.BlockSpec((1, C, 1), lambda b, h: (b, 0, 0)),
            ],
            out_specs=pl.BlockSpec((1, C, tile_hw), lambda b, h: (b, 0, h)),
        ),
        compiler_params=pltpu.CompilerParams(
            dimension_semantics=("parallel", "parallel"),
            vmem_limit_bytes=vmem_limit),
    )(x, gate)
    return out


# ---------------------------------------------------------------------------
# Public wrapper
# ---------------------------------------------------------------------------
def se_block(x_nchw, w1, b1, w2, b2, *, block_budget_bytes=None):
    """SEBlock forward. x_nchw: (B, C, H, W); w1: (Cr, C); w2: (C, Cr)
    (1x1-conv weights squeezed to 2D). `block_budget_bytes` overrides the
    auto-derived per-block VMEM budget (testing / tuning)."""
    B, C, H, W = x_nchw.shape
    HW = H * W
    Cr = w1.shape[0]

    x = x_nchw.reshape(B, C, HW)                      # free view, HW on lanes
    # Pre-transpose 1x1-conv weights once (no in-grid relayout of invariants).
    w1t = jnp.asarray(w1, dtype=jnp.float32).T        # (C, Cr)
    w2t = jnp.asarray(w2, dtype=jnp.float32).T        # (Cr, C)
    b1_2d = jnp.asarray(b1, dtype=jnp.float32).reshape(1, Cr)
    b2_2d = jnp.asarray(b2, dtype=jnp.float32).reshape(1, C)

    vmem_limit, auto_budget = _vmem_budgets(x.dtype.itemsize)
    block_budget = block_budget_bytes if block_budget_bytes else auto_budget

    slab = C * HW * x.dtype.itemsize                  # one batch element's bytes
    if slab <= block_budget:
        out = _se_single_pass(x, w1t, b1_2d, w2t, b2_2d, HW,
                              block_budget, vmem_limit)
    else:
        out = _se_two_pass(x, w1t, b1_2d, w2t, b2_2d, HW,
                           block_budget, vmem_limit)
    return out.reshape(B, C, H, W)


def se_block_ref(x, w1, b1, w2, b2):
    # Pure-JAX reference matching PyTorch SEBlock semantics (f32 math).
    xf = x.astype(jnp.float32)
    mean = jnp.mean(xf, axis=(2, 3))                           # (B, C)
    y1 = jnp.maximum(mean @ w1.T + b1, 0.0)                    # (B, Cr)
    y2 = jax.nn.sigmoid(y1 @ w2.T + b2)                        # (B, C)
    return xf * y2[:, :, None, None]


# ---------------------------------------------------------------------------
# Demo / self-test
# ---------------------------------------------------------------------------
if __name__ == "__main__":
    def run_case(name, B, C, H, W, reduction, dtype,
                 block_budget_bytes=None, atol=1e-5, rtol=1e-5):
        Cr = max(1, C // reduction)
        key = jax.random.PRNGKey(0)
        kx, k1, k2, k3, k4 = jax.random.split(key, 5)
        x = jax.random.normal(kx, (B, C, H, W), dtype=jnp.float32).astype(dtype)
        w1 = jax.random.normal(k1, (Cr, C), dtype=jnp.float32) * 0.2
        b1 = jax.random.normal(k2, (Cr,), dtype=jnp.float32) * 0.1
        w2 = jax.random.normal(k3, (C, Cr), dtype=jnp.float32) * 0.2
        b2 = jax.random.normal(k4, (C,), dtype=jnp.float32) * 0.1

        out = jax.block_until_ready(
            se_block(x, w1, b1, w2, b2, block_budget_bytes=block_budget_bytes))
        ref = se_block_ref(x, w1, b1, w2, b2)
        assert out.dtype == dtype, f"{name}: dtype mismatch"
        assert jnp.allclose(out.astype(jnp.float32), ref, atol=atol, rtol=rtol), \
            f"{name}: mismatch vs reference"

    # f32 / bf16 single-pass (default generation-aware budget).
    run_case("f32 single-pass", 8, 32, 16, 16, 8, jnp.float32)
    run_case("bf16 single-pass", 8, 32, 16, 16, 8, jnp.bfloat16,
             atol=1e-2, rtol=1e-2)
    # Batch-tiled single-pass with a non-divisor Bt (cdiv grid, partial block).
    run_case("f32 batch-tiled partial block", 5, 16, 8, 8, 8, jnp.float32,
             block_budget_bytes=8 * 1024)
    # Forced two-pass fallback: HW tiled in 128-lane tiles.
    run_case("f32 two-pass fallback", 8, 32, 16, 16, 8, jnp.float32,
             block_budget_bytes=16 * 1024)
    # Fallback with a ragged (masked) last HW tile, bf16 activations.
    run_case("bf16 two-pass masked tail", 2, 8, 20, 20, 4, jnp.bfloat16,
             block_budget_bytes=4 * 1024, atol=1e-2, rtol=1e-2)

    print("KERNEL_OK")
</pallas_src>

<mosaic_0001>
module attributes {stable_mosaic.version = 11 : i64} {
  func.func @_se_single_pass_kernel(%arg0: i32, %arg1: memref<8x32x256xf32, #tpu.memory_space<vmem>>, %arg2: memref<32x4xf32, #tpu.memory_space<vmem>>, %arg3: memref<1x4xf32, #tpu.memory_space<vmem>>, %arg4: memref<4x32xf32, #tpu.memory_space<vmem>>, %arg5: memref<1x32xf32, #tpu.memory_space<vmem>>, %arg6: memref<8x32x256xf32, #tpu.memory_space<vmem>>) attributes {dimension_semantics = [#tpu.dimension_semantics<parallel>], iteration_bounds = array<i64: 1>, scalar_prefetch = 0 : i64, scratch_operands = 0 : i64, tpu.core_type = #tpu.core_type<tc>, window_params = [{transform_indices = @transform_0, window_bounds = array<i64: 8, 32, 256>}, {pipeline_mode = #tpu.pipeline_mode<synchronous>, transform_indices = @transform_1, window_bounds = array<i64: 32, 4>}, {pipeline_mode = #tpu.pipeline_mode<synchronous>, transform_indices = @transform_2, window_bounds = array<i64: 1, 4>}, {pipeline_mode = #tpu.pipeline_mode<synchronous>, transform_indices = @transform_3, window_bounds = array<i64: 4, 32>}, {pipeline_mode = #tpu.pipeline_mode<synchronous>, transform_indices = @transform_4, window_bounds = array<i64: 1, 32>}, {transform_indices = @transform_5, window_bounds = array<i64: 8, 32, 256>}]} {
    %c0 = arith.constant 0 : index
    %c0_0 = arith.constant 0 : index
    %c0_1 = arith.constant 0 : index
    %0 = vector.load %arg1[%c0, %c0_0, %c0_1] : memref<8x32x256xf32, #tpu.memory_space<vmem>>, vector<8x32x256xf32>
    %cst = arith.constant dense<0.000000e+00> : vector<8x32xf32>
    %1 = vector.multi_reduction <add>, %0, %cst [2] : vector<8x32x256xf32> to vector<8x32xf32>
    %cst_2 = arith.constant 3.906250e-03 : f32
    %2 = vector.broadcast %cst_2 : f32 to vector<8x32xf32>
    %3 = arith.mulf %1, %2 : vector<8x32xf32>
    %c0_3 = arith.constant 0 : index
    %c0_4 = arith.constant 0 : index
    %4 = vector.load %arg2[%c0_3, %c0_4] : memref<32x4xf32, #tpu.memory_space<vmem>>, vector<32x4xf32>
    %cst_5 = arith.constant dense<0.000000e+00> : vector<8x4xf32>
    %5 = tpu.matmul %3, %4, %cst_5 {dimension_numbers = #tpu.dot_dimension_numbers<[1], [0], [0], [1], [0, 0, 1, 1], [], []>} : vector<8x32xf32>, vector<32x4xf32>, vector<8x4xf32> -> vector<8x4xf32>
    %c0_6 = arith.constant 0 : index
    %c0_7 = arith.constant 0 : index
    %6 = vector.load %arg3[%c0_6, %c0_7] : memref<1x4xf32, #tpu.memory_space<vmem>>, vector<1x4xf32>
    %7 = vector.broadcast %6 : vector<1x4xf32> to vector<8x4xf32>
    %8 = arith.addf %5, %7 : vector<8x4xf32>
    %cst_8 = arith.constant 0.000000e+00 : f32
    %9 = vector.broadcast %cst_8 : f32 to vector<8x4xf32>
    %10 = arith.maximumf %8, %9 : vector<8x4xf32>
    %c0_9 = arith.constant 0 : index
    %c0_10 = arith.constant 0 : index
    %11 = vector.load %arg4[%c0_9, %c0_10] : memref<4x32xf32, #tpu.memory_space<vmem>>, vector<4x32xf32>
    %cst_11 = arith.constant dense<0.000000e+00> : vector<8x32xf32>
    %12 = tpu.matmul %10, %11, %cst_11 {dimension_numbers = #tpu.dot_dimension_numbers<[1], [0], [0], [1], [0, 0, 1, 1], [], []>} : vector<8x4xf32>, vector<4x32xf32>, vector<8x32xf32> -> vector<8x32xf32>
    %c0_12 = arith.constant 0 : index
    %c0_13 = arith.constant 0 : index
    %13 = vector.load %arg5[%c0_12, %c0_13] : memref<1x32xf32, #tpu.memory_space<vmem>>, vector<1x32xf32>
    %14 = vector.broadcast %13 : vector<1x32xf32> to vector<8x32xf32>
    %15 = arith.addf %12, %14 : vector<8x32xf32>
    %16 = arith.negf %15 : vector<8x32xf32>
    %17 = math.exp %16 : vector<8x32xf32>
    %cst_14 = arith.constant 1.000000e+00 : f32
    %18 = vector.broadcast %cst_14 : f32 to vector<8x32xf32>
    %19 = arith.addf %18, %17 : vector<8x32xf32>
    %20 = arith.divf %18, %19 : vector<8x32xf32>
    %c0_15 = arith.constant 0 : index
    %c0_16 = arith.constant 0 : index
    %c0_17 = arith.constant 0 : index
    %21 = vector.load %arg1[%c0_15, %c0_16, %c0_17] : memref<8x32x256xf32, #tpu.memory_space<vmem>>, vector<8x32x256xf32>
    %22 = vector.shape_cast %20 : vector<8x32xf32> to vector<8x32x1xf32>
    %23 = vector.broadcast %22 : vector<8x32x1xf32> to vector<8x32x256xf32>
    %24 = arith.mulf %21, %23 : vector<8x32x256xf32>
    %c0_18 = arith.constant 0 : index
    %c0_19 = arith.constant 0 : index
    %c0_20 = arith.constant 0 : index
    %25 = vector.load %arg6[%c0_18, %c0_19, %c0_20] : memref<8x32x256xf32, #tpu.memory_space<vmem>>, vector<8x32x256xf32>
    tpu.vector_store %arg6[%c0_18, %c0_19, %c0_20], %24 {strides = array<i32>} : memref<8x32x256xf32, #tpu.memory_space<vmem>>, vector<8x32x256xf32>,
    return
  }
  func.func @transform_0(%arg0: i32) -> (i32, i32, i32) {
    %c0_i32 = arith.constant 0 : i32
    %c0_i32_0 = arith.constant 0 : i32
    %c0_i32_1 = arith.constant 0 : i32
    return %arg0, %c0_i32, %c0_i32_0 : i32, i32, i32
  }
  func.func @transform_1(%arg0: i32) -> (i32, i32) {
    %c0_i32 = arith.constant 0 : i32
    %c0_i32_0 = arith.constant 0 : i32
    %c0_i32_1 = arith.constant 0 : i32
    return %c0_i32, %c0_i32_0 : i32, i32
  }
  func.func @transform_2(%arg0: i32) -> (i32, i32) {
    %c0_i32 = arith.constant 0 : i32
    %c0_i32_0 = arith.constant 0 : i32
    %c0_i32_1 = arith.constant 0 : i32
    return %c0_i32, %c0_i32_0 : i32, i32
  }
  func.func @transform_3(%arg0: i32) -> (i32, i32) {
    %c0_i32 = arith.constant 0 : i32
    %c0_i32_0 = arith.constant 0 : i32
    %c0_i32_1 = arith.constant 0 : i32
    return %c0_i32, %c0_i32_0 : i32, i32
  }
  func.func @transform_4(%arg0: i32) -> (i32, i32) {
    %c0_i32 = arith.constant 0 : i32
    %c0_i32_0 = arith.constant 0 : i32
    %c0_i32_1 = arith.constant 0 : i32
    return %c0_i32, %c0_i32_0 : i32, i32
  }
  func.func @transform_5(%arg0: i32) -> (i32, i32, i32) {
    %c0_i32 = arith.constant 0 : i32
    %c0_i32_0 = arith.constant 0 : i32
    %c0_i32_1 = arith.constant 0 : i32
    return %arg0, %c0_i32, %c0_i32_0 : i32, i32, i32
  }
}

</mosaic_0001>

<llo_original>
// kernel: tpu_custom_call.1
$region0: #{tpu_custom_call.1}
  #allocation0 [shape = 'u32[]', space=smem, size = 0x4, offset = 0x4, fixed_abs, tag = 'smem constant byte address 0x4 - core index']
  #allocation1 [shape = 'u32[144,128]{1,0:T(1,128)}', space=vmem, size = 0x12000, scoped, tag = 'internal scratch']
  %s0 = inlined_call_operand.hbm [shape: f32[8,32,256], index: 0, kind: input, shape index: {}]
  %s1 = inlined_call_operand.vmem [shape: f32[32,4], index: 1, kind: input, shape index: {}]
  %s2 = inlined_call_operand.vmem [shape: f32[1,4], index: 2, kind: input, shape index: {}]
  %s3 = inlined_call_operand.vmem [shape: f32[4,32], index: 3, kind: input, shape index: {}]
  %s4 = inlined_call_operand.vmem [shape: f32[1,32], index: 4, kind: input, shape index: {}]
  %s5 = inlined_call_operand.hbm [shape: f32[8,32,256], index: 5, kind: output, shape index: {}]
  %s6 = sld [smem:[#allocation0]]
  $region34: #{tpu_custom_call.1} parent=0
    _
  %s8 = ssub.s32 1, %s6
  %s9 = scalar_select 0, %s8, %s6
  $region1: #{tpu_custom_call.1} parent=0
    #allocation2 [shape = 'u8[262144]{0}', space=vmem, size = 0x40000, scoped, tag = 'input window, operand 0, single buffered']
    #allocation3 [shape = 's32[1]{0}', space=sflag, size = 0x4, scoped, tag = 'scoped memory for tpu_custom_call.1']
    #allocation4 [shape = 's32[1]{0}', space=sflag, size = 0x4, scoped, tag = 'scoped memory for tpu_custom_call.1']
    #allocation5 [shape = 'u8[262144]{0}', space=vmem, size = 0x40000, scoped, tag = 'output window, operand 0, single buffered']
    %10 = vsyncpa [#allocation3], 0
    %11 = vsyncpa [#allocation4], 0
    // Predicated region
    $region2: #{tpu_custom_call.1} parent=1 // pred_check
      _
    $region3: #{tpu_custom_call.1} parent=1 // pred_check_branch
      %13 = sbr.rel (0) target = $region5
    $region4: #{tpu_custom_call.1} parent=1 // pred_region
      %s15 = ssub.s32 8192, 8192
      %16 = vsyncadd [#allocation3], %s15
      %s17 = sshll.u32 [#allocation2], 4
      %s18 = int_to_ptr.vmem [resolvable:$true] %s17
      %23 = dma.hbm_to_vmem [thread:$0]  %s0, 8192, %s18, [#allocation3], 256, 256, 16
    $region5: #{tpu_custom_call.1} parent=1 // pred_fallthru
      _
    // Predicated region
    $region6: #{tpu_custom_call.1} parent=1 // pred_check
      _
    $region7: #{tpu_custom_call.1} parent=1 // pred_check_branch
      %25 = sbr.rel (0) target = $region9
    $region8: #{tpu_custom_call.1} parent=1 // pred_region
      _
    $region9: #{tpu_custom_call.1} parent=1 // pred_fallthru
      _
    // Predicated region
    $region10: #{tpu_custom_call.1} parent=1 // pred_check
      _
    $region11: #{tpu_custom_call.1} parent=1 // pred_check_branch
      %27 = sbr.rel (0) target = $region13
    $region12: #{tpu_custom_call.1} parent=1 // pred_region
      _
    $region13: #{tpu_custom_call.1} parent=1 // pred_fallthru
      _
    // Predicated region
    $region14: #{tpu_custom_call.1} parent=1 // pred_check
      _
    $region15: #{tpu_custom_call.1} parent=1 // pred_check_branch
      %29 = sbr.rel (0) target = $region17
    $region16: #{tpu_custom_call.1} parent=1 // pred_region
      _
    $region17: #{tpu_custom_call.1} parent=1 // pred_fallthru
      _
    // Predicated region
    $region18: #{tpu_custom_call.1} parent=1 // pred_check
      _
    $region19: #{tpu_custom_call.1} parent=1 // pred_check_branch
      %31 = sbr.rel (0) target = $region21
    $region20: #{tpu_custom_call.1} parent=1 // pred_region
      _
    $region21: #{tpu_custom_call.1} parent=1 // pred_fallthru
      _
    // Predicated region
    $region22: #{tpu_custom_call.1} parent=1 // pred_check
      _
    $region23: #{tpu_custom_call.1} parent=1 // pred_check_branch
      %33 = sbr.rel (0) target = $region25
    $region24: #{tpu_custom_call.1} parent=1 // pred_region
      %34 = dma.done [#allocation3], 8192
    $region25: #{tpu_custom_call.1} parent=1 // pred_fallthru
      _
    %v35 = vld [vmem:[#allocation2] sm:$0xff]
    %v36 = vld [vmem:[#allocation2 + $0x8] sm:$0xff]
    %v37 = vld [vmem:[#allocation2 + $0x10] sm:$0xff]
    %v38 = vld [vmem:[#allocation2 + $0x18] sm:$0xff]
    %v39 = vld [vmem:[#allocation2 + $0x20] sm:$0xff]
    %v40 = vld [vmem:[#allocation2 + $0x28] sm:$0xff]
    %v41 = vld [vmem:[#allocation2 + $0x30] sm:$0xff]
    %v42 = vld [vmem:[#allocation2 + $0x38] sm:$0xff]
    %v43 = vld [vmem:[#allocation2 + $0x40] sm:$0xff]
    %v44 = vld [vmem:[#allocation2 + $0x48] sm:$0xff]
    %v45 = vld [vmem:[#allocation2 + $0x50] sm:$0xff]
    %v46 = vld [vmem:[#allocation2 + $0x58] sm:$0xff]
    %v47 = vld [vmem:[#allocation2 + $0x60] sm:$0xff]
    %v48 = vld [vmem:[#allocation2 + $0x68] sm:$0xff]
    %v49 = vld [vmem:[#allocation2 + $0x70] sm:$0xff]
    %v50 = vld [vmem:[#allocation2 + $0x78] sm:$0xff]
    %v51 = vld [vmem:[#allocation2 + $0x80] sm:$0xff]
    %v52 = vld [vmem:[#allocation2 + $0x88] sm:$0xff]
    %v53 = vld [vmem:[#allocation2 + $0x90] sm:$0xff]
    %v54 = vld [vmem:[#allocation2 + $0x98] sm:$0xff]
    %v55 = vld [vmem:[#allocation2 + $0xa0] sm:$0xff]
    %v56 = vld [vmem:[#allocation2 + $0xa8] sm:$0xff]
    %v57 = vld [vmem:[#allocation2 + $0xb0] sm:$0xff]
    %v58 = vld [vmem:[#allocation2 + $0xb8] sm:$0xff]
    %v59 = vld [vmem:[#allocation2 + $0xc0] sm:$0xff]
    %v60 = vld [vmem:[#allocation2 + $0xc8] sm:$0xff]
    %v61 = vld [vmem:[#allocation2 + $0xd0] sm:$0xff]
    %v62 = vld [vmem:[#allocation2 + $0xd8] sm:$0xff]
    %v63 = vld [vmem:[#allocation2 + $0xe0] sm:$0xff]
    %v64 = vld [vmem:[#allocation2 + $0xe8] sm:$0xff]
    %v65 = vld [vmem:[#allocation2 + $0xf0] sm:$0xff]
    %v66 = vld [vmem:[#allocation2 + $0xf8] sm:$0xff]
    %v67 = vld [vmem:[#allocation2 + $0x100] sm:$0xff]
    %v68 = vld [vmem:[#allocation2 + $0x108] sm:$0xff]
    %v69 = vld [vmem:[#allocation2 + $0x110] sm:$0xff]
    %v70 = vld [vmem:[#allocation2 + $0x118] sm:$0xff]
    %v71 = vld [vmem:[#allocation2 + $0x120] sm:$0xff]
    %v72 = vld [vmem:[#allocation2 + $0x128] sm:$0xff]
    %v73 = vld [vmem:[#allocation2 + $0x130] sm:$0xff]
    %v74 = vld [vmem:[#allocation2 + $0x138] sm:$0xff]
    %v75 = vld [vmem:[#allocation2 + $0x140] sm:$0xff]
    %v76 = vld [vmem:[#allocation2 + $0x148] sm:$0xff]
    %v77 = vld [vmem:[#allocation2 + $0x150] sm:$0xff]
    %v78 = vld [vmem:[#allocation2 + $0x158] sm:$0xff]
    %v79 = vld [vmem:[#allocation2 + $0x160] sm:$0xff]
    %v80 = vld [vmem:[#allocation2 + $0x168] sm:$0xff]
    %v81 = vld [vmem:[#allocation2 + $0x170] sm:$0xff]
    %v82 = vld [vmem:[#allocation2 + $0x178] sm:$0xff]
    %v83 = vld [vmem:[#allocation2 + $0x180] sm:$0xff]
    %v84 = vld [vmem:[#allocation2 + $0x188] sm:$0xff]
    %v85 = vld [vmem:[#allocation2 + $0x190] sm:$0xff]
    %v86 = vld [vmem:[#allocation2 + $0x198] sm:$0xff]
    %v87 = vld [vmem:[#allocation2 + $0x1a0] sm:$0xff]
    %v88 = vld [vmem:[#allocation2 + $0x1a8] sm:$0xff]
    %v89 = vld [vmem:[#allocation2 + $0x1b0] sm:$0xff]
    %v90 = vld [vmem:[#allocation2 + $0x1b8] sm:$0xff]
    %v91 = vld [vmem:[#allocation2 + $0x1c0] sm:$0xff]
    %v92 = vld [vmem:[#allocation2 + $0x1c8] sm:$0xff]
    %v93 = vld [vmem:[#allocation2 + $0x1d0] sm:$0xff]
    %v94 = vld [vmem:[#allocation2 + $0x1d8] sm:$0xff]
    %v95 = vld [vmem:[#allocation2 + $0x1e0] sm:$0xff]
    %v96 = vld [vmem:[#allocation2 + $0x1e8] sm:$0xff]
    %v97 = vld [vmem:[#allocation2 + $0x1f0] sm:$0xff]
    %v98 = vld [vmem:[#allocation2 + $0x1f8] sm:$0xff]
    %v99 = vadd.f32 %v35, %v36
    %100 = vadd.xlane.f32.xlu0 %v99
    %v101 = vpop.xlane.xlu0 %100
    %v102 = vadd.f32 %v37, %v38
    %103 = vadd.xlane.f32.xlu0 %v102
    %v104 = vpop.xlane.xlu0 %103
    %v105 = vadd.f32 %v39, %v40
    %106 = vadd.xlane.f32.xlu0 %v105
    %v107 = vpop.xlane.xlu0 %106
    %v108 = vadd.f32 %v41, %v42
    %109 = vadd.xlane.f32.xlu0 %v108
    %v110 = vpop.xlane.xlu0 %109
    %v111 = vadd.f32 %v43, %v44
    %112 = vadd.xlane.f32.xlu0 %v111
    %v113 = vpop.xlane.xlu0 %112
    %v114 = vadd.f32 %v45, %v46
    %115 = vadd.xlane.f32.xlu0 %v114
    %v116 = vpop.xlane.xlu0 %115
    %v117 = vadd.f32 %v47, %v48
    %118 = vadd.xlane.f32.xlu0 %v117
    %v119 = vpop.xlane.xlu0 %118
    %v120 = vadd.f32 %v49, %v50
    %121 = vadd.xlane.f32.xlu0 %v120
    %v122 = vpop.xlane.xlu0 %121
    %v123 = vadd.f32 %v51, %v52
    %124 = vadd.xlane.f32.xlu0 %v123
    %v125 = vpop.xlane.xlu0 %124
    %v126 = vadd.f32 %v53, %v54
    %127 = vadd.xlane.f32.xlu0 %v126
    %v128 = vpop.xlane.xlu0 %127
    %v129 = vadd.f32 %v55, %v56
    %130 = vadd.xlane.f32.xlu0 %v129
    %v131 = vpop.xlane.xlu0 %130
    %v132 = vadd.f32 %v57, %v58
    %133 = vadd.xlane.f32.xlu0 %v132
    %v134 = vpop.xlane.xlu0 %133
    %v135 = vadd.f32 %v59, %v60
    %136 = vadd.xlane.f32.xlu0 %v135
    %v137 = vpop.xlane.xlu0 %136
    %v138 = vadd.f32 %v61, %v62
    %139 = vadd.xlane.f32.xlu0 %v138
    %v140 = vpop.xlane.xlu0 %139
    %v141 = vadd.f32 %v63, %v64
    %142 = vadd.xlane.f32.xlu0 %v141
    %v143 = vpop.xlane.xlu0 %142
    %v144 = vadd.f32 %v65, %v66
    %145 = vadd.xlane.f32.xlu0 %v144
    %v146 = vpop.xlane.xlu0 %145
    %v147 = vadd.f32 %v67, %v68
    %148 = vadd.xlane.f32.xlu0 %v147
    %v149 = vpop.xlane.xlu0 %148
    %v150 = vadd.f32 %v69, %v70
    %151 = vadd.xlane.f32.xlu0 %v150
    %v152 = vpop.xlane.xlu0 %151
    %v153 = vadd.f32 %v71, %v72
    %154 = vadd.xlane.f32.xlu0 %v153
    %v155 = vpop.xlane.xlu0 %154
    %v156 = vadd.f32 %v73, %v74
    %157 = vadd.xlane.f32.xlu0 %v156
    %v158 = vpop.xlane.xlu0 %157
    %v159 = vadd.f32 %v75, %v76
    %160 = vadd.xlane.f32.xlu0 %v159
    %v161 = vpop.xlane.xlu0 %160
    %v162 = vadd.f32 %v77, %v78
    %163 = vadd.xlane.f32.xlu0 %v162
    %v164 = vpop.xlane.xlu0 %163
    %v165 = vadd.f32 %v79, %v80
    %166 = vadd.xlane.f32.xlu0 %v165
    %v167 = vpop.xlane.xlu0 %166
    %v168 = vadd.f32 %v81, %v82
    %169 = vadd.xlane.f32.xlu0 %v168
    %v170 = vpop.xlane.xlu0 %169
    %v171 = vadd.f32 %v83, %v84
    %172 = vadd.xlane.f32.xlu0 %v171
    %v173 = vpop.xlane.xlu0 %172
    %v174 = vadd.f32 %v85, %v86
    %175 = vadd.xlane.f32.xlu0 %v174
    %v176 = vpop.xlane.xlu0 %175
    %v177 = vadd.f32 %v87, %v88
    %178 = vadd.xlane.f32.xlu0 %v177
    %v179 = vpop.xlane.xlu0 %178
    %v180 = vadd.f32 %v89, %v90
    %181 = vadd.xlane.f32.xlu0 %v180
    %v182 = vpop.xlane.xlu0 %181
    %v183 = vadd.f32 %v91, %v92
    %184 = vadd.xlane.f32.xlu0 %v183
    %v185 = vpop.xlane.xlu0 %184
    %v186 = vadd.f32 %v93, %v94
    %187 = vadd.xlane.f32.xlu0 %v186
    %v188 = vpop.xlane.xlu0 %187
    %v189 = vadd.f32 %v95, %v96
    %190 = vadd.xlane.f32.xlu0 %v189
    %v191 = vpop.xlane.xlu0 %190
    %v192 = vadd.f32 %v97, %v98
    %193 = vadd.xlane.f32.xlu0 %v192
    %v194 = vpop.xlane.xlu0 %193
    %v195 = vmul.f32 %v101, 0.00390625
    %v196 = vmul.f32 %v104, 0.00390625
    %v197 = vmul.f32 %v107, 0.00390625
    %v198 = vmul.f32 %v110, 0.00390625
    %v199 = vmul.f32 %v113, 0.00390625
    %v200 = vmul.f32 %v116, 0.00390625
    %v201 = vmul.f32 %v119, 0.00390625
    %v202 = vmul.f32 %v122, 0.00390625
    %v203 = vmul.f32 %v125, 0.00390625
    %v204 = vmul.f32 %v128, 0.00390625
    %v205 = vmul.f32 %v131, 0.00390625
    %v206 = vmul.f32 %v134, 0.00390625
    %v207 = vmul.f32 %v137, 0.00390625
    %v208 = vmul.f32 %v140, 0.00390625
    %v209 = vmul.f32 %v143, 0.00390625
    %v210 = vmul.f32 %v146, 0.00390625
    %v211 = vmul.f32 %v149, 0.00390625
    %v212 = vmul.f32 %v152, 0.00390625
    %v213 = vmul.f32 %v155, 0.00390625
    %v214 = vmul.f32 %v158, 0.00390625
    %v215 = vmul.f32 %v161, 0.00390625
    %v216 = vmul.f32 %v164, 0.00390625
    %v217 = vmul.f32 %v167, 0.00390625
    %v218 = vmul.f32 %v170, 0.00390625
    %v219 = vmul.f32 %v173, 0.00390625
    %v220 = vmul.f32 %v176, 0.00390625
    %v221 = vmul.f32 %v179, 0.00390625
    %v222 = vmul.f32 %v182, 0.00390625
    %v223 = vmul.f32 %v185, 0.00390625
    %v224 = vmul.f32 %v188, 0.00390625
    %v225 = vmul.f32 %v191, 0.00390625
    %v226 = vmul.f32 %v194, 0.00390625
    %v227 = vld [vmem:[%s1] sm:$0xff]
    %v228 = vld [vmem:[%s1 + $0x8] sm:$0xff]
    %v229 = vld [vmem:[%s1 + $0x10] sm:$0xff]
    %v230 = vld [vmem:[%s1 + $0x18] sm:$0xff]
    %v231 = vld [vmem:[%s2] sm:$0x1]
    %v233 = vlaneseq
    %v234 = vshrl.u32 %v233, 7
    %v235 = vsub.s32 0, %v234
    %v236 = vrot.slane %v231, %v235
    %v270 = vlaneseq
    %v271 = vand.u32 %v270, 127
    %v272 = vlaneseq
    %v273 = vshrl.u32 %v272, 7
    %v274 = vsub.s32 %v271, %v273
    %v275 = vrot.slane %v195, %v274
    %v276 = vadd.s32 %v271, 4294967288
    %v277 = vlaneseq
    %v278 = vshrl.u32 %v277, 7
    %v279 = vsub.s32 %v276, %v278
    %v280 = vrot.slane %v196, %v279
    %vm281 = vcmask 130112
    %v282 = vsel %vm281, %v280, %v275
    %v283 = vadd.s32 %v271, 4294967280
    %v284 = vlaneseq
    %v285 = vshrl.u32 %v284, 7
    %v286 = vsub.s32 %v283, %v285
    %v287 = vrot.slane %v197, %v286
    %vm288 = vcmask 195712
    %v289 = vsel %vm288, %v287, %v282
    %v290 = vadd.s32 %v271, 4294967272
    %v291 = vlaneseq
    %v292 = vshrl.u32 %v291, 7
    %v293 = vsub.s32 %v290, %v292
    %v294 = vrot.slane %v198, %v293
    %vm295 = vcmask 261312
    %v296 = vsel %vm295, %v294, %v289
    %v297 = vlaneseq
    %v298 = vshrl.u32 %v297, 7
    %v299 = vsub.s32 %v271, %v298
    %v300 = vrot.slane %v199, %v299
    %v301 = vlaneseq
    %v302 = vshrl.u32 %v301, 7
    %v303 = vsub.s32 %v276, %v302
    %v304 = vrot.slane %v200, %v303
    %v305 = vsel %vm281, %v304, %v300
    %v306 = vlaneseq
    %v307 = vshrl.u32 %v306, 7
    %v308 = vsub.s32 %v283, %v307
    %v309 = vrot.slane %v201, %v308
    %v310 = vsel %vm288, %v309, %v305
    %v311 = vlaneseq
    %v312 = vshrl.u32 %v311, 7
    %v313 = vsub.s32 %v290, %v312
    %v314 = vrot.slane %v202, %v313
    %v315 = vsel %vm295, %v314, %v310
    %v316 = vlaneseq
    %v317 = vshrl.u32 %v316, 7
    %v318 = vsub.s32 %v271, %v317
    %v319 = vrot.slane %v203, %v318
    %v320 = vlaneseq
    %v321 = vshrl.u32 %v320, 7
    %v322 = vsub.s32 %v276, %v321
    %v323 = vrot.slane %v204, %v322
    %v324 = vsel %vm281, %v323, %v319
    %v325 = vlaneseq
    %v326 = vshrl.u32 %v325, 7
    %v327 = vsub.s32 %v283, %v326
    %v328 = vrot.slane %v205, %v327
    %v329 = vsel %vm288, %v328, %v324
    %v330 = vlaneseq
    %v331 = vshrl.u32 %v330, 7
    %v332 = vsub.s32 %v290, %v331
    %v333 = vrot.slane %v206, %v332
    %v334 = vsel %vm295, %v333, %v329
    %v335 = vlaneseq
    %v336 = vshrl.u32 %v335, 7
    %v337 = vsub.s32 %v271, %v336
    %v338 = vrot.slane %v207, %v337
    %v339 = vlaneseq
    %v340 = vshrl.u32 %v339, 7
    %v341 = vsub.s32 %v276, %v340
    %v342 = vrot.slane %v208, %v341
    %v343 = vsel %vm281, %v342, %v338
    %v344 = vlaneseq
    %v345 = vshrl.u32 %v344, 7
    %v346 = vsub.s32 %v283, %v345
    %v347 = vrot.slane %v209, %v346
    %v348 = vsel %vm288, %v347, %v343
    %v349 = vlaneseq
    %v350 = vshrl.u32 %v349, 7
    %v351 = vsub.s32 %v290, %v350
    %v352 = vrot.slane %v210, %v351
    %v353 = vsel %vm295, %v352, %v348
    %v354 = vlaneseq
    %v355 = vshrl.u32 %v354, 7
    %v356 = vsub.s32 %v271, %v355
    %v357 = vrot.slane %v211, %v356
    %v358 = vlaneseq
    %v359 = vshrl.u32 %v358, 7
    %v360 = vsub.s32 %v276, %v359
    %v361 = vrot.slane %v212, %v360
    %v362 = vsel %vm281, %v361, %v357
    %v363 = vlaneseq
    %v364 = vshrl.u32 %v363, 7
    %v365 = vsub.s32 %v283, %v364
    %v366 = vrot.slane %v213, %v365
    %v367 = vsel %vm288, %v366, %v362
    %v368 = vlaneseq
    %v369 = vshrl.u32 %v368, 7
    %v370 = vsub.s32 %v290, %v369
    %v371 = vrot.slane %v214, %v370
    %v372 = vsel %vm295, %v371, %v367
    %v373 = vlaneseq
    %v374 = vshrl.u32 %v373, 7
    %v375 = vsub.s32 %v271, %v374
    %v376 = vrot.slane %v215, %v375
    %v377 = vlaneseq
    %v378 = vshrl.u32 %v377, 7
    %v379 = vsub.s32 %v276, %v378
    %v380 = vrot.slane %v216, %v379
    %v381 = vsel %vm281, %v380, %v376
    %v382 = vlaneseq
    %v383 = vshrl.u32 %v382, 7
    %v384 = vsub.s32 %v283, %v383
    %v385 = vrot.slane %v217, %v384
    %v386 = vsel %vm288, %v385, %v381
    %v387 = vlaneseq
    %v388 = vshrl.u32 %v387, 7
    %v389 = vsub.s32 %v290, %v388
    %v390 = vrot.slane %v218, %v389
    %v391 = vsel %vm295, %v390, %v386
    %v392 = vlaneseq
    %v393 = vshrl.u32 %v392, 7
    %v394 = vsub.s32 %v271, %v393
    %v395 = vrot.slane %v219, %v394
    %v396 = vlaneseq
    %v397 = vshrl.u32 %v396, 7
    %v398 = vsub.s32 %v276, %v397
    %v399 = vrot.slane %v220, %v398
    %v400 = vsel %vm281, %v399, %v395
    %v401 = vlaneseq
    %v402 = vshrl.u32 %v401, 7
    %v403 = vsub.s32 %v283, %v402
    %v404 = vrot.slane %v221, %v403
    %v405 = vsel %vm288, %v404, %v400
    %v406 = vlaneseq
    %v407 = vshrl.u32 %v406, 7
    %v408 = vsub.s32 %v290, %v407
    %v409 = vrot.slane %v222, %v408
    %v410 = vsel %vm295, %v409, %v405
    %v411 = vlaneseq
    %v412 = vshrl.u32 %v411, 7
    %v413 = vsub.s32 %v271, %v412
    %v414 = vrot.slane %v223, %v413
    %v415 = vlaneseq
    %v416 = vshrl.u32 %v415, 7
    %v417 = vsub.s32 %v276, %v416
    %v418 = vrot.slane %v224, %v417
    %v419 = vsel %vm281, %v418, %v414
    %v420 = vlaneseq
    %v421 = vshrl.u32 %v420, 7
    %v422 = vsub.s32 %v283, %v421
    %v423 = vrot.slane %v225, %v422
    %v424 = vsel %vm288, %v423, %v419
    %v425 = vlaneseq
    %v426 = vshrl.u32 %v425, 7
    %v427 = vsub.s32 %v290, %v426
    %v428 = vrot.slane %v226, %v427
    %v429 = vsel %vm295, %v428, %v424
    %vm430 = vcmask 1041409
    %v431 = vsel %vm430, %v315, %v296
    %vm432 = vcmask 1042434
    %v433 = vsel %vm432, %v334, %v431
    %vm434 = vcmask 1043459
    %v435 = vsel %vm434, %v353, %v433
    %vm436 = vcmask 1044484
    %v437 = vsel %vm436, %v372, %v435
    %vm438 = vcmask 1045509
    %v439 = vsel %vm438, %v391, %v437
    %vm440 = vcmask 1046534
    %v441 = vsel %vm440, %v410, %v439
    %vm442 = vcmask 1047559
    %v443 = vsel %vm442, %v429, %v441
    %vm444 = vcmask 261120
    %v445 = vsel %vm444, %v443, 0
    %447 = vmatprep.subr.mxu0 0.0
    %448 = vmatpush1.msra.mxu0 %v227
    %449 = vmatprep.subr.mxu0 0.0
    %450 = vmatpush1.msra.mxu0 %v228
    %451 = vmatprep.subr.mxu0 0.0
    %452 = vmatpush1.msra.mxu0 %v229
    %453 = vmatprep.subr.mxu0 0.0
    %454 = vmatpush1.msra.mxu0 %v230
    %455 = vmatprep.subr.mxu0 0.0
    %456 = vmatpush1.msra.mxu0 0.0
    %457 = vmatprep.subr.mxu0 0.0
    %458 = vmatpush1.msra.mxu0 0.0
    %459 = vmatprep.subr.mxu0 0.0
    %460 = vmatpush1.msra.mxu0 0.0
    %461 = vmatprep.subr.mxu0 0.0
    %462 = vmatpush1.msra.mxu0 0.0
    %463 = vmatprep.subr.mxu0 0.0
    %464 = vmatpush1.msra.mxu0 0.0
    %465 = vmatprep.subr.mxu0 0.0
    %466 = vmatpush1.msra.mxu0 0.0
    %467 = vmatprep.subr.mxu0 0.0
    %468 = vmatpush1.msra.mxu0 0.0
    %469 = vmatprep.subr.mxu0 0.0
    %470 = vmatpush1.msra.mxu0 0.0
    %471 = vmatprep.subr.mxu0 0.0
    %472 = vmatpush1.msra.mxu0 0.0
    %473 = vmatprep.subr.mxu0 0.0
    %474 = vmatpush1.msra.mxu0 0.0
    %475 = vmatprep.subr.mxu0 0.0
    %476 = vmatpush1.msra.mxu0 0.0
    %477 = vmatprep.subr.mxu0 0.0
    %478 = vmatpush1.msra.mxu0 0.0
    %479 = vmatprep.subr.mxu0 0.0
    %480 = vmatpush1.msra.mxu0 0.0
    %481 = vmatprep.subr.mxu0 0.0
    %482 = vmatpush1.msra.mxu0 0.0
    %483 = vmatprep.subr.mxu0 0.0
    %484 = vmatpush1.msra.mxu0 0.0
    %485 = vmatprep.subr.mxu0 0.0
    %486 = vmatpush1.msra.mxu0 0.0
    %487 = vmatprep.subr.mxu0 0.0
    %488 = vmatpush1.msra.mxu0 0.0
    %489 = vmatprep.subr.mxu0 0.0
    %490 = vmatpush1.msra.mxu0 0.0
    %491 = vmatprep.subr.mxu0 0.0
    %492 = vmatpush1.msra.mxu0 0.0
    %493 = vmatprep.subr.mxu0 0.0
    %494 = vmatpush1.msra.mxu0 0.0
    %495 = vmatprep.subr.mxu0 0.0
    %496 = vmatpush1.msra.mxu0 0.0
    %497 = vmatprep.subr.mxu0 0.0
    %498 = vmatpush1.msra.mxu0 0.0
    %499 = vmatprep.subr.mxu0 0.0
    %500 = vmatpush1.msra.mxu0 0.0
    %501 = vmatprep.subr.mxu0 0.0
    %502 = vmatpush1.msra.mxu0 0.0
    %503 = vmatprep.subr.mxu0 0.0
    %504 = vmatpush1.msra.mxu0 0.0
    %505 = vmatprep.subr.mxu0 0.0
    %506 = vmatpush1.msra.mxu0 0.0
    %507 = vmatprep.subr.mxu0 0.0
    %508 = vmatpush1.msra.mxu0 0.0
    %509 = vmatprep.subr.mxu0 0.0
    %510 = vmatpush1.msra.mxu0 0.0
    %511 = vmatprep.mubr.f32.mxu0 0.0
    %512 = vmatmul.mubr.f32.gmra.mrb[0].mxu0 %v445
    %v513 = vpop.f32.mrb[0].mxu0
    %v514 = vadd.f32 %v236, %v513
    %v515 = vpop.f32.mrb[0].mxu0
    %516 = vdwg.mxu0
    %v517 = vmax.f32 %v514, 0.0
    %v518 = vld [vmem:[%s3] sm:$0xf]
    %v519 = vld [vmem:[%s4] sm:$0x1]
    %v521 = vlaneseq
    %v522 = vshrl.u32 %v521, 7
    %v523 = vsub.s32 0, %v522
    %v524 = vrot.slane %v519, %v523
    %vm526 = vcmask 31744
    %v528 = vsel %vm526, %v517, 0
    %vm530 = vcmask 1043456
    %v532 = vsel %vm530, %v518, 0
    %534 = vmatprep.subr.mxu0 0.0
    %535 = vmatpush1.msra.mxu0 %v532
    %536 = vmatprep.subr.mxu0 0.0
    %537 = vmatpush1.msra.mxu0 0.0
    %538 = vmatprep.subr.mxu0 0.0
    %539 = vmatpush1.msra.mxu0 0.0
    %540 = vmatprep.subr.mxu0 0.0
    %541 = vmatpush1.msra.mxu0 0.0
    %542 = vmatprep.subr.mxu0 0.0
    %543 = vmatpush1.msra.mxu0 0.0
    %544 = vmatprep.subr.mxu0 0.0
    %545 = vmatpush1.msra.mxu0 0.0
    %546 = vmatprep.subr.mxu0 0.0
    %547 = vmatpush1.msra.mxu0 0.0
    %548 = vmatprep.subr.mxu0 0.0
    %549 = vmatpush1.msra.mxu0 0.0
    %550 = vmatprep.subr.mxu0 0.0
    %551 = vmatpush1.msra.mxu0 0.0
    %552 = vmatprep.subr.mxu0 0.0
    %553 = vmatpush1.msra.mxu0 0.0
    %554 = vmatprep.subr.mxu0 0.0
    %555 = vmatpush1.msra.mxu0 0.0
    %556 = vmatprep.subr.mxu0 0.0
    %557 = vmatpush1.msra.mxu0 0.0
    %558 = vmatprep.subr.mxu0 0.0
    %559 = vmatpush1.msra.mxu0 0.0
    %560 = vmatprep.subr.mxu0 0.0
    %561 = vmatpush1.msra.mxu0 0.0
    %562 = vmatprep.subr.mxu0 0.0
    %563 = vmatpush1.msra.mxu0 0.0
    %564 = vmatprep.subr.mxu0 0.0
    %565 = vmatpush1.msra.mxu0 0.0
    %566 = vmatprep.subr.mxu0 0.0
    %567 = vmatpush1.msra.mxu0 0.0
    %568 = vmatprep.subr.mxu0 0.0
    %569 = vmatpush1.msra.mxu0 0.0
    %570 = vmatprep.subr.mxu0 0.0
    %571 = vmatpush1.msra.mxu0 0.0
    %572 = vmatprep.subr.mxu0 0.0
    %573 = vmatpush1.msra.mxu0 0.0
    %574 = vmatprep.subr.mxu0 0.0
    %575 = vmatpush1.msra.mxu0 0.0
    %576 = vmatprep.subr.mxu0 0.0
    %577 = vmatpush1.msra.mxu0 0.0
    %578 = vmatprep.subr.mxu0 0.0
    %579 = vmatpush1.msra.mxu0 0.0
    %580 = vmatprep.subr.mxu0 0.0
    %581 = vmatpush1.msra.mxu0 0.0
    %582 = vmatprep.subr.mxu0 0.0
    %583 = vmatpush1.msra.mxu0 0.0
    %584 = vmatprep.subr.mxu0 0.0
    %585 = vmatpush1.msra.mxu0 0.0
    %586 = vmatprep.subr.mxu0 0.0
    %587 = vmatpush1.msra.mxu0 0.0
    %588 = vmatprep.subr.mxu0 0.0
    %589 = vmatpush1.msra.mxu0 0.0
    %590 = vmatprep.subr.mxu0 0.0
    %591 = vmatpush1.msra.mxu0 0.0
    %592 = vmatprep.subr.mxu0 0.0
    %593 = vmatpush1.msra.mxu0 0.0
    %594 = vmatprep.subr.mxu0 0.0
    %595 = vmatpush1.msra.mxu0 0.0
    %596 = vmatprep.subr.mxu0 0.0
    %597 = vmatpush1.msra.mxu0 0.0
    %598 = vmatprep.mubr.f32.mxu0 0.0
    %599 = vmatmul.mubr.f32.gmra.mrb[0].mxu0 %v528
    %v600 = vpop.f32.mrb[0].mxu0
    %v601 = vadd.f32 %v524, %v600
    %v602 = vpop.f32.mrb[0].mxu0
    %603 = vdwg.mxu0
    %v604 = vxor.u32 %v601, 2147483648
    %v605 = vmul.f32 %v604, 1.442695
    %v606 = vpow.pop %v605
    %v607 = vadd.f32 %v606, 1.0
    %v608 = vrcp.pop %v607
    %v609 = vmul.f32 1.0, %v608
    %v610 = vlaneseq
    %v611 = vshrl.u32 %v610, 7
    %v612 = vsub.s32 0, %v611
    %v613 = vrot.slane %v609, %v612
    %615 = vbcast.lane.b32.xlu0 %v613, 256
    %v616 = vpop.permute.xlu0 %615
    %s618 = sor.u32 256, 8
    %619 = vbcast.lane.b32.xlu0 %v613, %s618
    %v620 = vpop.permute.xlu0 %619
    %s622 = sor.u32 256, 16
    %623 = vbcast.lane.b32.xlu0 %v613, %s622
    %v624 = vpop.permute.xlu0 %623
    %s626 = sor.u32 256, 24
    %627 = vbcast.lane.b32.xlu0 %v613, %s626
    %v628 = vpop.permute.xlu0 %627
    %v629 = vlaneseq
    %v630 = vshrl.u32 %v629, 7
    %v631 = vsub.s32 1, %v630
    %v632 = vrot.slane %v609, %v631
    %634 = vbcast.lane.b32.xlu0 %v632, 256
    %v635 = vpop.permute.xlu0 %634
    %s637 = sor.u32 256, 8
    %638 = vbcast.lane.b32.xlu0 %v632, %s637
    %v639 = vpop.permute.xlu0 %638
    %s641 = sor.u32 256, 16
    %642 = vbcast.lane.b32.xlu0 %v632, %s641
    %v643 = vpop.permute.xlu0 %642
    %s645 = sor.u32 256, 24
    %646 = vbcast.lane.b32.xlu0 %v632, %s645
    %v647 = vpop.permute.xlu0 %646
    %v648 = vlaneseq
    %v649 = vshrl.u32 %v648, 7
    %v650 = vsub.s32 2, %v649
    %v651 = vrot.slane %v609, %v650
    %653 = vbcast.lane.b32.xlu0 %v651, 256
    %v654 = vpop.permute.xlu0 %653
    %s656 = sor.u32 256, 8
    %657 = vbcast.lane.b32.xlu0 %v651, %s656
    %v658 = vpop.permute.xlu0 %657
    %s660 = sor.u32 256, 16
    %661 = vbcast.lane.b32.xlu0 %v651, %s660
    %v662 = vpop.permute.xlu0 %661
    %s664 = sor.u32 256, 24
    %665 = vbcast.lane.b32.xlu0 %v651, %s664
    %v666 = vpop.permute.xlu0 %665
    %v667 = vlaneseq
    %v668 = vshrl.u32 %v667, 7
    %v669 = vsub.s32 3, %v668
    %v670 = vrot.slane %v609, %v669
    %672 = vbcast.lane.b32.xlu0 %v670, 256
    %v673 = vpop.permute.xlu0 %672
    %s675 = sor.u32 256, 8
    %676 = vbcast.lane.b32.xlu0 %v670, %s675
    %v677 = vpop.permute.xlu0 %676
    %s679 = sor.u32 256, 16
    %680 = vbcast.lane.b32.xlu0 %v670, %s679
    %v681 = vpop.permute.xlu0 %680
    %s683 = sor.u32 256, 24
    %684 = vbcast.lane.b32.xlu0 %v670, %s683
    %v685 = vpop.permute.xlu0 %684
    %v686 = vlaneseq
    %v687 = vshrl.u32 %v686, 7
    %v688 = vsub.s32 4, %v687
    %v689 = vrot.slane %v609, %v688
    %691 = vbcast.lane.b32.xlu0 %v689, 256
    %v692 = vpop.permute.xlu0 %691
    %s694 = sor.u32 256, 8
    %695 = vbcast.lane.b32.xlu0 %v689, %s694
    %v696 = vpop.permute.xlu0 %695
    %s698 = sor.u32 256, 16
    %699 = vbcast.lane.b32.xlu0 %v689, %s698
    %v700 = vpop.permute.xlu0 %699
    %s702 = sor.u32 256, 24
    %703 = vbcast.lane.b32.xlu0 %v689, %s702
    %v704 = vpop.permute.xlu0 %703
    %v705 = vlaneseq
    %v706 = vshrl.u32 %v705, 7
    %v707 = vsub.s32 5, %v706
    %v708 = vrot.slane %v609, %v707
    %710 = vbcast.lane.b32.xlu0 %v708, 256
    %v711 = vpop.permute.xlu0 %710
    %s713 = sor.u32 256, 8
    %714 = vbcast.lane.b32.xlu0 %v708, %s713
    %v715 = vpop.permute.xlu0 %714
    %s717 = sor.u32 256, 16
    %718 = vbcast.lane.b32.xlu0 %v708, %s717
    %v719 = vpop.permute.xlu0 %718
    %s721 = sor.u32 256, 24
    %722 = vbcast.lane.b32.xlu0 %v708, %s721
    %v723 = vpop.permute.xlu0 %722
    %v724 = vlaneseq
    %v725 = vshrl.u32 %v724, 7
    %v726 = vsub.s32 6, %v725
    %v727 = vrot.slane %v609, %v726
    %729 = vbcast.lane.b32.xlu0 %v727, 256
    %v730 = vpop.permute.xlu0 %729
    %s732 = sor.u32 256, 8
    %733 = vbcast.lane.b32.xlu0 %v727, %s732
    %v734 = vpop.permute.xlu0 %733
    %s736 = sor.u32 256, 16
    %737 = vbcast.lane.b32.xlu0 %v727, %s736
    %v738 = vpop.permute.xlu0 %737
    %s740 = sor.u32 256, 24
    %741 = vbcast.lane.b32.xlu0 %v727, %s740
    %v742 = vpop.permute.xlu0 %741
    %v743 = vlaneseq
    %v744 = vshrl.u32 %v743, 7
    %v745 = vsub.s32 7, %v744
    %v746 = vrot.slane %v609, %v745
    %748 = vbcast.lane.b32.xlu0 %v746, 256
    %v749 = vpop.permute.xlu0 %748
    %s751 = sor.u32 256, 8
    %752 = vbcast.lane.b32.xlu0 %v746, %s751
    %v753 = vpop.permute.xlu0 %752
    %s755 = sor.u32 256, 16
    %756 = vbcast.lane.b32.xlu0 %v746, %s755
    %v757 = vpop.permute.xlu0 %756
    %s759 = sor.u32 256, 24
    %760 = vbcast.lane.b32.xlu0 %v746, %s759
    %v761 = vpop.permute.xlu0 %760
    %v762 = vmul.f32 %v35, %v616
    %v763 = vmul.f32 %v36, %v616
    %v764 = vmul.f32 %v37, %v620
    %v765 = vmul.f32 %v38, %v620
    %v766 = vmul.f32 %v39, %v624
    %v767 = vmul.f32 %v40, %v624
    %v768 = vmul.f32 %v41, %v628
    %v769 = vmul.f32 %v42, %v628
    %v770 = vmul.f32 %v43, %v635
    %v771 = vmul.f32 %v44, %v635
    %v772 = vmul.f32 %v45, %v639
    %v773 = vmul.f32 %v46, %v639
    %v774 = vmul.f32 %v47, %v643
    %v775 = vmul.f32 %v48, %v643
    %v776 = vmul.f32 %v49, %v647
    %v777 = vmul.f32 %v50, %v647
    %v778 = vmul.f32 %v51, %v654
    %v779 = vmul.f32 %v52, %v654
    %v780 = vmul.f32 %v53, %v658
    %v781 = vmul.f32 %v54, %v658
    %v782 = vmul.f32 %v55, %v662
    %v783 = vmul.f32 %v56, %v662
    %v784 = vmul.f32 %v57, %v666
    %v785 = vmul.f32 %v58, %v666
    %v786 = vmul.f32 %v59, %v673
    %v787 = vmul.f32 %v60, %v673
    %v788 = vmul.f32 %v61, %v677
    %v789 = vmul.f32 %v62, %v677
    %v790 = vmul.f32 %v63, %v681
    %v791 = vmul.f32 %v64, %v681
    %v792 = vmul.f32 %v65, %v685
    %v793 = vmul.f32 %v66, %v685
    %v794 = vmul.f32 %v67, %v692
    %v795 = vmul.f32 %v68, %v692
    %v796 = vmul.f32 %v69, %v696
    %v797 = vmul.f32 %v70, %v696
    %v798 = vmul.f32 %v71, %v700
    %v799 = vmul.f32 %v72, %v700
    %v800 = vmul.f32 %v73, %v704
    %v801 = vmul.f32 %v74, %v704
    %v802 = vmul.f32 %v75, %v711
    %v803 = vmul.f32 %v76, %v711
    %v804 = vmul.f32 %v77, %v715
    %v805 = vmul.f32 %v78, %v715
    %v806 = vmul.f32 %v79, %v719
    %v807 = vmul.f32 %v80, %v719
    %v808 = vmul.f32 %v81, %v723
    %v809 = vmul.f32 %v82, %v723
    %v810 = vmul.f32 %v83, %v730
    %v811 = vmul.f32 %v84, %v730
    %v812 = vmul.f32 %v85, %v734
    %v813 = vmul.f32 %v86, %v734
    %v814 = vmul.f32 %v87, %v738
    %v815 = vmul.f32 %v88, %v738
    %v816 = vmul.f32 %v89, %v742
    %v817 = vmul.f32 %v90, %v742
    %v818 = vmul.f32 %v91, %v749
    %v819 = vmul.f32 %v92, %v749
    %v820 = vmul.f32 %v93, %v753
    %v821 = vmul.f32 %v94, %v753
    %v822 = vmul.f32 %v95, %v757
    %v823 = vmul.f32 %v96, %v757
    %v824 = vmul.f32 %v97, %v761
    %v825 = vmul.f32 %v98, %v761
    %826 = vst [vmem:[#allocation5] sm:$0xff] %v762
    %827 = vst [vmem:[#allocation5 + $0x8] sm:$0xff] %v763
    %828 = vst [vmem:[#allocation5 + $0x10] sm:$0xff] %v764
    %829 = vst [vmem:[#allocation5 + $0x18] sm:$0xff] %v765
    %830 = vst [vmem:[#allocation5 + $0x20] sm:$0xff] %v766
    %831 = vst [vmem:[#allocation5 + $0x28] sm:$0xff] %v767
    %832 = vst [vmem:[#allocation5 + $0x30] sm:$0xff] %v768
    %833 = vst [vmem:[#allocation5 + $0x38] sm:$0xff] %v769
    %834 = vst [vmem:[#allocation5 + $0x40] sm:$0xff] %v770
    %835 = vst [vmem:[#allocation5 + $0x48] sm:$0xff] %v771
    %836 = vst [vmem:[#allocation5 + $0x50] sm:$0xff] %v772
    %837 = vst [vmem:[#allocation5 + $0x58] sm:$0xff] %v773
    %838 = vst [vmem:[#allocation5 + $0x60] sm:$0xff] %v774
    %839 = vst [vmem:[#allocation5 + $0x68] sm:$0xff] %v775
    %840 = vst [vmem:[#allocation5 + $0x70] sm:$0xff] %v776
    %841 = vst [vmem:[#allocation5 + $0x78] sm:$0xff] %v777
    %842 = vst [vmem:[#allocation5 + $0x80] sm:$0xff] %v778
    %843 = vst [vmem:[#allocation5 + $0x88] sm:$0xff] %v779
    %844 = vst [vmem:[#allocation5 + $0x90] sm:$0xff] %v780
    %845 = vst [vmem:[#allocation5 + $0x98] sm:$0xff] %v781
    %846 = vst [vmem:[#allocation5 + $0xa0] sm:$0xff] %v782
    %847 = vst [vmem:[#allocation5 + $0xa8] sm:$0xff] %v783
    %848 = vst [vmem:[#allocation5 + $0xb0] sm:$0xff] %v784
    %849 = vst [vmem:[#allocation5 + $0xb8] sm:$0xff] %v785
    %850 = vst [vmem:[#allocation5 + $0xc0] sm:$0xff] %v786
    %851 = vst [vmem:[#allocation5 + $0xc8] sm:$0xff] %v787
    %852 = vst [vmem:[#allocation5 + $0xd0] sm:$0xff] %v788
    %853 = vst [vmem:[#allocation5 + $0xd8] sm:$0xff] %v789
    %854 = vst [vmem:[#allocation5 + $0xe0] sm:$0xff] %v790
    %855 = vst [vmem:[#allocation5 + $0xe8] sm:$0xff] %v791
    %856 = vst [vmem:[#allocation5 + $0xf0] sm:$0xff] %v792
    %857 = vst [vmem:[#allocation5 + $0xf8] sm:$0xff] %v793
    %858 = vst [vmem:[#allocation5 + $0x100] sm:$0xff] %v794
    %859 = vst [vmem:[#allocation5 + $0x108] sm:$0xff] %v795
    %860 = vst [vmem:[#allocation5 + $0x110] sm:$0xff] %v796
    %861 = vst [vmem:[#allocation5 + $0x118] sm:$0xff] %v797
    %862 = vst [vmem:[#allocation5 + $0x120] sm:$0xff] %v798
    %863 = vst [vmem:[#allocation5 + $0x128] sm:$0xff] %v799
    %864 = vst [vmem:[#allocation5 + $0x130] sm:$0xff] %v800
    %865 = vst [vmem:[#allocation5 + $0x138] sm:$0xff] %v801
    %866 = vst [vmem:[#allocation5 + $0x140] sm:$0xff] %v802
    %867 = vst [vmem:[#allocation5 + $0x148] sm:$0xff] %v803
    %868 = vst [vmem:[#allocation5 + $0x150] sm:$0xff] %v804
    %869 = vst [vmem:[#allocation5 + $0x158] sm:$0xff] %v805
    %870 = vst [vmem:[#allocation5 + $0x160] sm:$0xff] %v806
    %871 = vst [vmem:[#allocation5 + $0x168] sm:$0xff] %v807
    %872 = vst [vmem:[#allocation5 + $0x170] sm:$0xff] %v808
    %873 = vst [vmem:[#allocation5 + $0x178] sm:$0xff] %v809
    %874 = vst [vmem:[#allocation5 + $0x180] sm:$0xff] %v810
    %875 = vst [vmem:[#allocation5 + $0x188] sm:$0xff] %v811
    %876 = vst [vmem:[#allocation5 + $0x190] sm:$0xff] %v812
    %877 = vst [vmem:[#allocation5 + $0x198] sm:$0xff] %v813
    %878 = vst [vmem:[#allocation5 + $0x1a0] sm:$0xff] %v814
    %879 = vst [vmem:[#allocation5 + $0x1a8] sm:$0xff] %v815
    %880 = vst [vmem:[#allocation5 + $0x1b0] sm:$0xff] %v816
    %881 = vst [vmem:[#allocation5 + $0x1b8] sm:$0xff] %v817
    %882 = vst [vmem:[#allocation5 + $0x1c0] sm:$0xff] %v818
    %883 = vst [vmem:[#allocation5 + $0x1c8] sm:$0xff] %v819
    %884 = vst [vmem:[#allocation5 + $0x1d0] sm:$0xff] %v820
    %885 = vst [vmem:[#allocation5 + $0x1d8] sm:$0xff] %v821
    %886 = vst [vmem:[#allocation5 + $0x1e0] sm:$0xff] %v822
    %887 = vst [vmem:[#allocation5 + $0x1e8] sm:$0xff] %v823
    %888 = vst [vmem:[#allocation5 + $0x1f0] sm:$0xff] %v824
    %889 = vst [vmem:[#allocation5 + $0x1f8] sm:$0xff] %v825
    // Predicated region
    $region26: #{tpu_custom_call.1} parent=1 // pred_check
      _
    $region27: #{tpu_custom_call.1} parent=1 // pred_check_branch
      %891 = sbr.rel (0) target = $region29
    $region28: #{tpu_custom_call.1} parent=1 // pred_region
      %s893 = ssub.s32 8192, 8192
      %894 = vsyncadd [#allocation4], %s893
      %s895 = sshll.u32 [#allocation5], 4
      %s896 = int_to_ptr.vmem [resolvable:$true] %s895
      %901 = dma.vmem_to_hbm [thread:$0]  %s896, 8192, %s5, [#allocation4], 256, 256, 16
    $region29: #{tpu_custom_call.1} parent=1 // pred_fallthru
      _
    // Predicated region
    $region30: #{tpu_custom_call.1} parent=1 // pred_check
      _
    $region31: #{tpu_custom_call.1} parent=1 // pred_check_branch
      %903 = sbr.rel (0) target = $region33
    $region32: #{tpu_custom_call.1} parent=1 // pred_region
      %904 = dma.done [#allocation4], 8192
    $region33: #{tpu_custom_call.1} parent=1 // pred_fallthru
      _
    %905 = vsyncpa [#allocation3], 1
    %906 = vsyncpa [#allocation4], 1

</llo_original>
